<compile_context>
chip_gen: v7x
topology: tpu7x:2x2x1
jax: 0.10.0
libtpu: 0.0.40
codegen_flags: <defaults>
</compile_context>

<pallas_src>
import jax
import jax.numpy as jnp
from jax.experimental import pallas as pl
from jax.experimental.pallas import tpu as pltpu


def _make_fused_kernel(n_layers):
    """Build the fused forward kernel for a fixed number of conv blocks."""

    def kernel(*refs):
        x_ref = refs[0]                                  # (1, L0, 1)
        conv_refs = refs[1:1 + 2 * n_layers]             # (w_stacked, bias) pairs
        wfc_ref = refs[1 + 2 * n_layers]                 # (F, N)
        bfc_ref = refs[2 + 2 * n_layers]                 # (1, N)
        o_ref = refs[3 + 2 * n_layers]                   # (1, 1, N)
        pad_ref, col_ref, pool_ref, flat_ref = refs[4 + 2 * n_layers:]

        h = x_ref[0]                                     # (L0, 1) time-major

        for li in range(n_layers):                       # static unroll
            w_ref = conv_refs[2 * li]                    # (3*C_in, C_out), taps stacked
            b_ref = conv_refs[2 * li + 1]                # (1, C_out)
            L, C_in = h.shape
            C_out = w_ref.shape[1]
            Lo = L // 2

            # ---- Conv1d(kernel=3, padding=1): halo'ed copy of h in VMEM ----
            zero_row = jnp.zeros((1, C_in), jnp.float32)
            pad_ref[0:1, 0:C_in] = zero_row
            pad_ref[L + 1:L + 2, 0:C_in] = zero_row
            pad_ref[1:L + 1, 0:C_in] = h
            x0 = pad_ref[pl.ds(0, L), pl.ds(0, C_in)]    # h[t-1] (tap 0)
            x1 = pad_ref[pl.ds(1, L), pl.ds(0, C_in)]    # h[t]   (tap 1)
            x2 = pad_ref[pl.ds(2, L), pl.ds(0, C_in)]    # h[t+1] (tap 2)

            if C_in == 1:
                # degenerate contraction dim -> pure VPU broadcast multiply-add
                y = (x0 * w_ref[0:1, :] + x1 * w_ref[1:2, :]
                     + x2 * w_ref[2:3, :] + b_ref[...])
            else:
                # im2col operand [x0 | x1 | x2] -> one MXU push instead of three
                col_ref[0:L, 0:C_in] = x0
                col_ref[0:L, C_in:2 * C_in] = x1
                col_ref[0:L, 2 * C_in:3 * C_in] = x2
                y = (jnp.dot(col_ref[0:L, 0:3 * C_in], w_ref[...],
                             preferred_element_type=jnp.float32)
                     + b_ref[...])
            y = jnp.maximum(y, 0.0)                      # ReLU

            # ---- MaxPool1d(2): stride-2 sublane reads + VPU max ----
            pool_ref[0:L, 0:C_out] = y
            even = pool_ref[pl.ds(0, Lo, stride=2), pl.ds(0, C_out)]
            odd = pool_ref[pl.ds(1, Lo, stride=2), pl.ds(0, C_out)]
            h = jnp.maximum(even, odd)                   # (Lo, C_out)

        # ---- flatten in time-major (l, c) order, straight from the value ----
        # fc weight is pre-permuted in the wrapper so this matches torch's
        # (B, C, L).view(B, -1) channel-major order.
        L_f, C_f = h.shape
        for l in range(L_f):                             # static unroll (epilogue)
            flat_ref[0:1, l * C_f:(l + 1) * C_f] = h[l:l + 1, :]

        # ---- Linear (Dropout is identity at eval) ----
        o_ref[0] = (jnp.dot(flat_ref[...], wfc_ref[...],
                            preferred_element_type=jnp.float32)
                    + bfc_ref[...]).astype(o_ref.dtype)

    return kernel


def my_network_cnn_forward(emg, params):
    """Fused Pallas forward: emg (B, *input_shape_emg) -> logits (B, num_classes).

    Dropout is identity (eval/inference semantics).
    """
    conv = params["conv"]
    n_layers = len(conv)
    B = emg.shape[0]
    x = emg.reshape(B, -1).astype(jnp.float32)[:, :, None]      # (B, L0, 1)
    L0 = x.shape[1]

    chan = [1] + [w.shape[0] for w, _ in conv]
    L = L0
    for _ in conv:
        assert L % 2 == 0, "MaxPool1d(2) requires an even length at every stage"
        L //= 2
    L_f, C_f = L, chan[-1]
    F = L_f * C_f
    fc_w, fc_b = params["fc_w"], params["fc_b"]
    N = fc_w.shape[0]
    assert fc_w.shape[1] == F
    C_all = max(chan)

    ops = [x]
    in_specs = [pl.BlockSpec((1, L0, 1), lambda b: (b, 0, 0))]
    for w, bvec in conv:
        C_out, C_in, _k = w.shape
        # stacked tap weight: row k*C_in + c multiplies im2col column k*C_in + c
        ws = jnp.transpose(w, (2, 1, 0)).reshape(3 * C_in, C_out)
        ops += [ws, bvec.reshape(1, C_out)]
        in_specs += [pl.BlockSpec((3 * C_in, C_out), lambda b: (0, 0)),
                     pl.BlockSpec((1, C_out), lambda b: (0, 0))]
    # permute fc weight from torch's (B, C, L).view(B, -1) order (c-major) to
    # the kernel's time-major (l, c) flatten order
    wfc = fc_w.reshape(N, C_f, L_f).transpose(2, 1, 0).reshape(F, N)
    ops += [wfc, fc_b.reshape(1, N)]
    in_specs += [pl.BlockSpec((F, N), lambda b: (0, 0)),
                 pl.BlockSpec((1, N), lambda b: (0, 0))]

    out = pl.pallas_call(
        _make_fused_kernel(n_layers),
        out_shape=jax.ShapeDtypeStruct((B, 1, N), jnp.float32),
        grid=(B,),
        in_specs=in_specs,
        out_specs=pl.BlockSpec((1, 1, N), lambda b: (b, 0, 0)),
        scratch_shapes=[
            pltpu.VMEM((L0 + 2, C_all), jnp.float32),    # halo-padded activations
            pltpu.VMEM((L0, 3 * C_all), jnp.float32),    # im2col operand
            pltpu.VMEM((L0, C_all), jnp.float32),        # pre-pool conv output
            pltpu.VMEM((1, F), jnp.float32),             # flattened features
        ],
        compiler_params=pltpu.CompilerParams(
            dimension_semantics=("parallel",)),          # 2 TCs on v7x; no-op on v5e/v6e
    )(*ops)
    # TODO(synk): training-mode dropout (stochastic masking) not implemented;
    # eval-mode dropout is identity, matching inference.
    return out.reshape(B, N)


def init_params(key, input_shape_emg, num_classes, hidden_sizes_emg):
    conv = []
    c_in = 1
    out_len = input_shape_emg[0] * input_shape_emg[1]
    for h in hidden_sizes_emg:
        key, kw, kb = jax.random.split(key, 3)
        w = jax.random.normal(kw, (h, c_in, 3), jnp.float32) * 0.3
        b = jax.random.normal(kb, (h,), jnp.float32) * 0.1
        conv.append((w, b))
        c_in = h
        out_len //= 2
    fc_in = out_len * hidden_sizes_emg[-1]
    key, kw, kb = jax.random.split(key, 3)
    fc_w = jax.random.normal(kw, (num_classes, fc_in), jnp.float32) * 0.1
    fc_b = jax.random.normal(kb, (num_classes,), jnp.float32) * 0.1
    return {"conv": conv, "fc_w": fc_w, "fc_b": fc_b}


def reference_forward(emg, params):
    """Pure-JAX reference mirroring the PyTorch module (NCL layout)."""
    B = emg.shape[0]
    h = emg.reshape(B, 1, -1)                     # (B, 1, L)
    for w, b in params["conv"]:
        L = h.shape[2]
        hp = jnp.pad(h, ((0, 0), (0, 0), (1, 1)))
        y = sum(jnp.einsum("bcl,oc->bol", hp[:, :, k:k + L], w[:, :, k])
                for k in range(3)) + b[None, :, None]
        y = jnp.maximum(y, 0.0)
        h = y.reshape(B, y.shape[1], L // 2, 2).max(-1)
    flat = h.reshape(B, -1)
    return flat @ params["fc_w"].T + params["fc_b"]


if __name__ == "__main__":
    input_shape_emg = (4, 16)          # flattened emg length = 64
    num_classes = 5
    hidden_sizes_emg = [8, 16]         # two conv blocks -> final length 16
    batch = 2

    key = jax.random.PRNGKey(0)
    key, k_x = jax.random.split(key)
    emg = jax.random.normal(k_x, (batch,) + input_shape_emg, jnp.float32)
    params = init_params(key, input_shape_emg, num_classes, hidden_sizes_emg)

    out = jax.block_until_ready(jax.jit(my_network_cnn_forward)(emg, params))
    ref = jax.block_until_ready(reference_forward(emg, params))

    assert out.shape == (batch, num_classes), out.shape
    # tolerance covers TPU default-precision f32 matmul (MXU bf16 passes)
    assert jnp.allclose(out, ref, rtol=1e-2, atol=1e-2), \
        float(jnp.max(jnp.abs(out - ref)))
    print("KERNEL_OK")
</pallas_src>

<mosaic_0001>
module attributes {stable_mosaic.version = 11 : i64} {
  func.func @kernel(%arg0: i32, %arg1: memref<1x64x1xf32, #tpu.memory_space<vmem>>, %arg2: memref<3x8xf32, #tpu.memory_space<vmem>>, %arg3: memref<1x8xf32, #tpu.memory_space<vmem>>, %arg4: memref<24x16xf32, #tpu.memory_space<vmem>>, %arg5: memref<1x16xf32, #tpu.memory_space<vmem>>, %arg6: memref<256x5xf32, #tpu.memory_space<vmem>>, %arg7: memref<1x5xf32, #tpu.memory_space<vmem>>, %arg8: memref<1x1x5xf32, #tpu.memory_space<vmem>>, %arg9: memref<66x16xf32, #tpu.memory_space<vmem>>, %arg10: memref<64x48xf32, #tpu.memory_space<vmem>>, %arg11: memref<64x16xf32, #tpu.memory_space<vmem>>, %arg12: memref<1x256xf32, #tpu.memory_space<vmem>>) attributes {dimension_semantics = [#tpu.dimension_semantics<parallel>], iteration_bounds = array<i64: 2>, scalar_prefetch = 0 : i64, scratch_operands = 4 : i64, tpu.core_type = #tpu.core_type<tc>, window_params = [{transform_indices = @transform_0, window_bounds = array<i64: 1, 64, 1>}, {pipeline_mode = #tpu.pipeline_mode<synchronous>, transform_indices = @transform_1, window_bounds = array<i64: 3, 8>}, {pipeline_mode = #tpu.pipeline_mode<synchronous>, transform_indices = @transform_2, window_bounds = array<i64: 1, 8>}, {pipeline_mode = #tpu.pipeline_mode<synchronous>, transform_indices = @transform_3, window_bounds = array<i64: 24, 16>}, {pipeline_mode = #tpu.pipeline_mode<synchronous>, transform_indices = @transform_4, window_bounds = array<i64: 1, 16>}, {pipeline_mode = #tpu.pipeline_mode<synchronous>, transform_indices = @transform_5, window_bounds = array<i64: 256, 5>}, {pipeline_mode = #tpu.pipeline_mode<synchronous>, transform_indices = @transform_6, window_bounds = array<i64: 1, 5>}, {transform_indices = @transform_7, window_bounds = array<i64: 1, 1, 5>}]} {
    %c0 = arith.constant 0 : index
    %c0_0 = arith.constant 0 : index
    %c0_1 = arith.constant 0 : index
    %0 = vector.load %arg1[%c0, %c0_0, %c0_1] : memref<1x64x1xf32, #tpu.memory_space<vmem>>, vector<1x64x1xf32>
    %1 = vector.shape_cast %0 : vector<1x64x1xf32> to vector<64x1xf32>
    %cst = arith.constant 0.000000e+00 : f32
    %2 = vector.broadcast %cst : f32 to vector<1x1xf32>
    %c0_2 = arith.constant 0 : index
    %c0_3 = arith.constant 0 : index
    %3 = vector.load %arg9[%c0_2, %c0_3] : memref<66x16xf32, #tpu.memory_space<vmem>>, vector<1x1xf32>
    tpu.vector_store %arg9[%c0_2, %c0_3], %2 {strides = array<i32>} : memref<66x16xf32, #tpu.memory_space<vmem>>, vector<1x1xf32>,
    %c65 = arith.constant 65 : index
    %c0_4 = arith.constant 0 : index
    %4 = vector.load %arg9[%c65, %c0_4] : memref<66x16xf32, #tpu.memory_space<vmem>>, vector<1x1xf32>
    tpu.vector_store %arg9[%c65, %c0_4], %2 {strides = array<i32>} : memref<66x16xf32, #tpu.memory_space<vmem>>, vector<1x1xf32>,
    %c1 = arith.constant 1 : index
    %c0_5 = arith.constant 0 : index
    %5 = vector.load %arg9[%c1, %c0_5] : memref<66x16xf32, #tpu.memory_space<vmem>>, vector<64x1xf32>
    tpu.vector_store %arg9[%c1, %c0_5], %1 {strides = array<i32>} : memref<66x16xf32, #tpu.memory_space<vmem>>, vector<64x1xf32>,
    %c0_6 = arith.constant 0 : index
    %c0_7 = arith.constant 0 : index
    %6 = vector.load %arg9[%c0_6, %c0_7] : memref<66x16xf32, #tpu.memory_space<vmem>>, vector<64x1xf32>
    %c1_8 = arith.constant 1 : index
    %c0_9 = arith.constant 0 : index
    %7 = vector.load %arg9[%c1_8, %c0_9] : memref<66x16xf32, #tpu.memory_space<vmem>>, vector<64x1xf32>
    %c2 = arith.constant 2 : index
    %c0_10 = arith.constant 0 : index
    %8 = vector.load %arg9[%c2, %c0_10] : memref<66x16xf32, #tpu.memory_space<vmem>>, vector<64x1xf32>
    %c0_11 = arith.constant 0 : index
    %c0_12 = arith.constant 0 : index
    %9 = vector.load %arg2[%c0_11, %c0_12] : memref<3x8xf32, #tpu.memory_space<vmem>>, vector<1x8xf32>
    %10 = vector.broadcast %6 : vector<64x1xf32> to vector<64x8xf32>
    %11 = vector.broadcast %9 : vector<1x8xf32> to vector<64x8xf32>
    %12 = arith.mulf %10, %11 : vector<64x8xf32>
    %c1_13 = arith.constant 1 : index
    %c0_14 = arith.constant 0 : index
    %13 = vector.load %arg2[%c1_13, %c0_14] : memref<3x8xf32, #tpu.memory_space<vmem>>, vector<1x8xf32>
    %14 = vector.broadcast %7 : vector<64x1xf32> to vector<64x8xf32>
    %15 = vector.broadcast %13 : vector<1x8xf32> to vector<64x8xf32>
    %16 = arith.mulf %14, %15 : vector<64x8xf32>
    %17 = arith.addf %12, %16 : vector<64x8xf32>
    %c2_15 = arith.constant 2 : index
    %c0_16 = arith.constant 0 : index
    %18 = vector.load %arg2[%c2_15, %c0_16] : memref<3x8xf32, #tpu.memory_space<vmem>>, vector<1x8xf32>
    %19 = vector.broadcast %8 : vector<64x1xf32> to vector<64x8xf32>
    %20 = vector.broadcast %18 : vector<1x8xf32> to vector<64x8xf32>
    %21 = arith.mulf %19, %20 : vector<64x8xf32>
    %22 = arith.addf %17, %21 : vector<64x8xf32>
    %c0_17 = arith.constant 0 : index
    %c0_18 = arith.constant 0 : index
    %23 = vector.load %arg3[%c0_17, %c0_18] : memref<1x8xf32, #tpu.memory_space<vmem>>, vector<1x8xf32>
    %24 = vector.broadcast %23 : vector<1x8xf32> to vector<64x8xf32>
    %25 = arith.addf %22, %24 : vector<64x8xf32>
    %cst_19 = arith.constant 0.000000e+00 : f32
    %26 = vector.broadcast %cst_19 : f32 to vector<64x8xf32>
    %27 = arith.maximumf %25, %26 : vector<64x8xf32>
    %c0_20 = arith.constant 0 : index
    %c0_21 = arith.constant 0 : index
    %28 = vector.load %arg11[%c0_20, %c0_21] : memref<64x16xf32, #tpu.memory_space<vmem>>, vector<64x8xf32>
    tpu.vector_store %arg11[%c0_20, %c0_21], %27 {strides = array<i32>} : memref<64x16xf32, #tpu.memory_space<vmem>>, vector<64x8xf32>,
    %c0_22 = arith.constant 0 : index
    %c0_23 = arith.constant 0 : index
    %29 = tpu.strided_load %arg11[%c0_22, %c0_23] {strides = array<i32: 2, 1>} : memref<64x16xf32, #tpu.memory_space<vmem>>, vector<32x8xf32>
    %c1_24 = arith.constant 1 : index
    %c0_25 = arith.constant 0 : index
    %30 = tpu.strided_load %arg11[%c1_24, %c0_25] {strides = array<i32: 2, 1>} : memref<64x16xf32, #tpu.memory_space<vmem>>, vector<32x8xf32>
    %31 = arith.maximumf %29, %30 : vector<32x8xf32>
    %cst_26 = arith.constant 0.000000e+00 : f32
    %32 = vector.broadcast %cst_26 : f32 to vector<1x8xf32>
    %c0_27 = arith.constant 0 : index
    %c0_28 = arith.constant 0 : index
    %33 = vector.load %arg9[%c0_27, %c0_28] : memref<66x16xf32, #tpu.memory_space<vmem>>, vector<1x8xf32>
    tpu.vector_store %arg9[%c0_27, %c0_28], %32 {strides = array<i32>} : memref<66x16xf32, #tpu.memory_space<vmem>>, vector<1x8xf32>,
    %c33 = arith.constant 33 : index
    %c0_29 = arith.constant 0 : index
    %34 = vector.load %arg9[%c33, %c0_29] : memref<66x16xf32, #tpu.memory_space<vmem>>, vector<1x8xf32>
    tpu.vector_store %arg9[%c33, %c0_29], %32 {strides = array<i32>} : memref<66x16xf32, #tpu.memory_space<vmem>>, vector<1x8xf32>,
    %c1_30 = arith.constant 1 : index
    %c0_31 = arith.constant 0 : index
    %35 = vector.load %arg9[%c1_30, %c0_31] : memref<66x16xf32, #tpu.memory_space<vmem>>, vector<32x8xf32>
    tpu.vector_store %arg9[%c1_30, %c0_31], %31 {strides = array<i32>} : memref<66x16xf32, #tpu.memory_space<vmem>>, vector<32x8xf32>,
    %c0_32 = arith.constant 0 : index
    %c0_33 = arith.constant 0 : index
    %36 = vector.load %arg9[%c0_32, %c0_33] : memref<66x16xf32, #tpu.memory_space<vmem>>, vector<32x8xf32>
    %c1_34 = arith.constant 1 : index
    %c0_35 = arith.constant 0 : index
    %37 = vector.load %arg9[%c1_34, %c0_35] : memref<66x16xf32, #tpu.memory_space<vmem>>, vector<32x8xf32>
    %c2_36 = arith.constant 2 : index
    %c0_37 = arith.constant 0 : index
    %38 = vector.load %arg9[%c2_36, %c0_37] : memref<66x16xf32, #tpu.memory_space<vmem>>, vector<32x8xf32>
    %c0_38 = arith.constant 0 : index
    %c0_39 = arith.constant 0 : index
    %39 = vector.load %arg10[%c0_38, %c0_39] : memref<64x48xf32, #tpu.memory_space<vmem>>, vector<32x8xf32>
    tpu.vector_store %arg10[%c0_38, %c0_39], %36 {strides = array<i32>} : memref<64x48xf32, #tpu.memory_space<vmem>>, vector<32x8xf32>,
    %c0_40 = arith.constant 0 : index
    %c8 = arith.constant 8 : index
    %40 = vector.load %arg10[%c0_40, %c8] : memref<64x48xf32, #tpu.memory_space<vmem>>, vector<32x8xf32>
    tpu.vector_store %arg10[%c0_40, %c8], %37 {strides = array<i32>} : memref<64x48xf32, #tpu.memory_space<vmem>>, vector<32x8xf32>,
    %c0_41 = arith.constant 0 : index
    %c16 = arith.constant 16 : index
    %41 = vector.load %arg10[%c0_41, %c16] : memref<64x48xf32, #tpu.memory_space<vmem>>, vector<32x8xf32>
    tpu.vector_store %arg10[%c0_41, %c16], %38 {strides = array<i32>} : memref<64x48xf32, #tpu.memory_space<vmem>>, vector<32x8xf32>,
    %c0_42 = arith.constant 0 : index
    %c0_43 = arith.constant 0 : index
    %42 = vector.load %arg10[%c0_42, %c0_43] : memref<64x48xf32, #tpu.memory_space<vmem>>, vector<32x24xf32>
    %c0_44 = arith.constant 0 : index
    %c0_45 = arith.constant 0 : index
    %43 = vector.load %arg4[%c0_44, %c0_45] : memref<24x16xf32, #tpu.memory_space<vmem>>, vector<24x16xf32>
    %cst_46 = arith.constant dense<0.000000e+00> : vector<32x16xf32>
    %44 = tpu.matmul %42, %43, %cst_46 {dimension_numbers = #tpu.dot_dimension_numbers<[1], [0], [0], [1], [0, 0, 1, 1], [], []>} : vector<32x24xf32>, vector<24x16xf32>, vector<32x16xf32> -> vector<32x16xf32>
    %c0_47 = arith.constant 0 : index
    %c0_48 = arith.constant 0 : index
    %45 = vector.load %arg5[%c0_47, %c0_48] : memref<1x16xf32, #tpu.memory_space<vmem>>, vector<1x16xf32>
    %46 = vector.broadcast %45 : vector<1x16xf32> to vector<32x16xf32>
    %47 = arith.addf %44, %46 : vector<32x16xf32>
    %cst_49 = arith.constant 0.000000e+00 : f32
    %48 = vector.broadcast %cst_49 : f32 to vector<32x16xf32>
    %49 = arith.maximumf %47, %48 : vector<32x16xf32>
    %c0_50 = arith.constant 0 : index
    %c0_51 = arith.constant 0 : index
    %50 = vector.load %arg11[%c0_50, %c0_51] : memref<64x16xf32, #tpu.memory_space<vmem>>, vector<32x16xf32>
    tpu.vector_store %arg11[%c0_50, %c0_51], %49 {strides = array<i32>} : memref<64x16xf32, #tpu.memory_space<vmem>>, vector<32x16xf32>,
    %c0_52 = arith.constant 0 : index
    %c0_53 = arith.constant 0 : index
    %51 = tpu.strided_load %arg11[%c0_52, %c0_53] {strides = array<i32: 2, 1>} : memref<64x16xf32, #tpu.memory_space<vmem>>, vector<16x16xf32>
    %c1_54 = arith.constant 1 : index
    %c0_55 = arith.constant 0 : index
    %52 = tpu.strided_load %arg11[%c1_54, %c0_55] {strides = array<i32: 2, 1>} : memref<64x16xf32, #tpu.memory_space<vmem>>, vector<16x16xf32>
    %53 = arith.maximumf %51, %52 : vector<16x16xf32>
    %54 = vector.extract_strided_slice %53 {offsets = [0, 0], sizes = [1, 16], strides = [1, 1]} : vector<16x16xf32> to vector<1x16xf32>
    %c0_56 = arith.constant 0 : index
    %c0_57 = arith.constant 0 : index
    %55 = vector.load %arg12[%c0_56, %c0_57] : memref<1x256xf32, #tpu.memory_space<vmem>>, vector<1x16xf32>
    tpu.vector_store %arg12[%c0_56, %c0_57], %54 {strides = array<i32>} : memref<1x256xf32, #tpu.memory_space<vmem>>, vector<1x16xf32>,
    %56 = vector.extract_strided_slice %53 {offsets = [1, 0], sizes = [1, 16], strides = [1, 1]} : vector<16x16xf32> to vector<1x16xf32>
    %c0_58 = arith.constant 0 : index
    %c16_59 = arith.constant 16 : index
    %57 = vector.load %arg12[%c0_58, %c16_59] : memref<1x256xf32, #tpu.memory_space<vmem>>, vector<1x16xf32>
    tpu.vector_store %arg12[%c0_58, %c16_59], %56 {strides = array<i32>} : memref<1x256xf32, #tpu.memory_space<vmem>>, vector<1x16xf32>,
    %58 = vector.extract_strided_slice %53 {offsets = [2, 0], sizes = [1, 16], strides = [1, 1]} : vector<16x16xf32> to vector<1x16xf32>
    %c0_60 = arith.constant 0 : index
    %c32 = arith.constant 32 : index
    %59 = vector.load %arg12[%c0_60, %c32] : memref<1x256xf32, #tpu.memory_space<vmem>>, vector<1x16xf32>
    tpu.vector_store %arg12[%c0_60, %c32], %58 {strides = array<i32>} : memref<1x256xf32, #tpu.memory_space<vmem>>, vector<1x16xf32>,
    %60 = vector.extract_strided_slice %53 {offsets = [3, 0], sizes = [1, 16], strides = [1, 1]} : vector<16x16xf32> to vector<1x16xf32>
    %c0_61 = arith.constant 0 : index
    %c48 = arith.constant 48 : index
    %61 = vector.load %arg12[%c0_61, %c48] : memref<1x256xf32, #tpu.memory_space<vmem>>, vector<1x16xf32>
    tpu.vector_store %arg12[%c0_61, %c48], %60 {strides = array<i32>} : memref<1x256xf32, #tpu.memory_space<vmem>>, vector<1x16xf32>,
    %62 = vector.extract_strided_slice %53 {offsets = [4, 0], sizes = [1, 16], strides = [1, 1]} : vector<16x16xf32> to vector<1x16xf32>
    %c0_62 = arith.constant 0 : index
    %c64 = arith.constant 64 : index
    %63 = vector.load %arg12[%c0_62, %c64] : memref<1x256xf32, #tpu.memory_space<vmem>>, vector<1x16xf32>
    tpu.vector_store %arg12[%c0_62, %c64], %62 {strides = array<i32>} : memref<1x256xf32, #tpu.memory_space<vmem>>, vector<1x16xf32>,
    %64 = vector.extract_strided_slice %53 {offsets = [5, 0], sizes = [1, 16], strides = [1, 1]} : vector<16x16xf32> to vector<1x16xf32>
    %c0_63 = arith.constant 0 : index
    %c80 = arith.constant 80 : index
    %65 = vector.load %arg12[%c0_63, %c80] : memref<1x256xf32, #tpu.memory_space<vmem>>, vector<1x16xf32>
    tpu.vector_store %arg12[%c0_63, %c80], %64 {strides = array<i32>} : memref<1x256xf32, #tpu.memory_space<vmem>>, vector<1x16xf32>,
    %66 = vector.extract_strided_slice %53 {offsets = [6, 0], sizes = [1, 16], strides = [1, 1]} : vector<16x16xf32> to vector<1x16xf32>
    %c0_64 = arith.constant 0 : index
    %c96 = arith.constant 96 : index
    %67 = vector.load %arg12[%c0_64, %c96] : memref<1x256xf32, #tpu.memory_space<vmem>>, vector<1x16xf32>
    tpu.vector_store %arg12[%c0_64, %c96], %66 {strides = array<i32>} : memref<1x256xf32, #tpu.memory_space<vmem>>, vector<1x16xf32>,
    %68 = vector.extract_strided_slice %53 {offsets = [7, 0], sizes = [1, 16], strides = [1, 1]} : vector<16x16xf32> to vector<1x16xf32>
    %c0_65 = arith.constant 0 : index
    %c112 = arith.constant 112 : index
    %69 = vector.load %arg12[%c0_65, %c112] : memref<1x256xf32, #tpu.memory_space<vmem>>, vector<1x16xf32>
    tpu.vector_store %arg12[%c0_65, %c112], %68 {strides = array<i32>} : memref<1x256xf32, #tpu.memory_space<vmem>>, vector<1x16xf32>,
    %70 = vector.extract_strided_slice %53 {offsets = [8, 0], sizes = [1, 16], strides = [1, 1]} : vector<16x16xf32> to vector<1x16xf32>
    %c0_66 = arith.constant 0 : index
    %c128 = arith.constant 128 : index
    %71 = vector.load %arg12[%c0_66, %c128] : memref<1x256xf32, #tpu.memory_space<vmem>>, vector<1x16xf32>
    tpu.vector_store %arg12[%c0_66, %c128], %70 {strides = array<i32>} : memref<1x256xf32, #tpu.memory_space<vmem>>, vector<1x16xf32>,
    %72 = vector.extract_strided_slice %53 {offsets = [9, 0], sizes = [1, 16], strides = [1, 1]} : vector<16x16xf32> to vector<1x16xf32>
    %c0_67 = arith.constant 0 : index
    %c144 = arith.constant 144 : index
    %73 = vector.load %arg12[%c0_67, %c144] : memref<1x256xf32, #tpu.memory_space<vmem>>, vector<1x16xf32>
    tpu.vector_store %arg12[%c0_67, %c144], %72 {strides = array<i32>} : memref<1x256xf32, #tpu.memory_space<vmem>>, vector<1x16xf32>,
    %74 = vector.extract_strided_slice %53 {offsets = [10, 0], sizes = [1, 16], strides = [1, 1]} : vector<16x16xf32> to vector<1x16xf32>
    %c0_68 = arith.constant 0 : index
    %c160 = arith.constant 160 : index
    %75 = vector.load %arg12[%c0_68, %c160] : memref<1x256xf32, #tpu.memory_space<vmem>>, vector<1x16xf32>
    tpu.vector_store %arg12[%c0_68, %c160], %74 {strides = array<i32>} : memref<1x256xf32, #tpu.memory_space<vmem>>, vector<1x16xf32>,
    %76 = vector.extract_strided_slice %53 {offsets = [11, 0], sizes = [1, 16], strides = [1, 1]} : vector<16x16xf32> to vector<1x16xf32>
    %c0_69 = arith.constant 0 : index
    %c176 = arith.constant 176 : index
    %77 = vector.load %arg12[%c0_69, %c176] : memref<1x256xf32, #tpu.memory_space<vmem>>, vector<1x16xf32>
    tpu.vector_store %arg12[%c0_69, %c176], %76 {strides = array<i32>} : memref<1x256xf32, #tpu.memory_space<vmem>>, vector<1x16xf32>,
    %78 = vector.extract_strided_slice %53 {offsets = [12, 0], sizes = [1, 16], strides = [1, 1]} : vector<16x16xf32> to vector<1x16xf32>
    %c0_70 = arith.constant 0 : index
    %c192 = arith.constant 192 : index
    %79 = vector.load %arg12[%c0_70, %c192] : memref<1x256xf32, #tpu.memory_space<vmem>>, vector<1x16xf32>
    tpu.vector_store %arg12[%c0_70, %c192], %78 {strides = array<i32>} : memref<1x256xf32, #tpu.memory_space<vmem>>, vector<1x16xf32>,
    %80 = vector.extract_strided_slice %53 {offsets = [13, 0], sizes = [1, 16], strides = [1, 1]} : vector<16x16xf32> to vector<1x16xf32>
    %c0_71 = arith.constant 0 : index
    %c208 = arith.constant 208 : index
    %81 = vector.load %arg12[%c0_71, %c208] : memref<1x256xf32, #tpu.memory_space<vmem>>, vector<1x16xf32>
    tpu.vector_store %arg12[%c0_71, %c208], %80 {strides = array<i32>} : memref<1x256xf32, #tpu.memory_space<vmem>>, vector<1x16xf32>,
    %82 = vector.extract_strided_slice %53 {offsets = [14, 0], sizes = [1, 16], strides = [1, 1]} : vector<16x16xf32> to vector<1x16xf32>
    %c0_72 = arith.constant 0 : index
    %c224 = arith.constant 224 : index
    %83 = vector.load %arg12[%c0_72, %c224] : memref<1x256xf32, #tpu.memory_space<vmem>>, vector<1x16xf32>
    tpu.vector_store %arg12[%c0_72, %c224], %82 {strides = array<i32>} : memref<1x256xf32, #tpu.memory_space<vmem>>, vector<1x16xf32>,
    %84 = vector.extract_strided_slice %53 {offsets = [15, 0], sizes = [1, 16], strides = [1, 1]} : vector<16x16xf32> to vector<1x16xf32>
    %c0_73 = arith.constant 0 : index
    %c240 = arith.constant 240 : index
    %85 = vector.load %arg12[%c0_73, %c240] : memref<1x256xf32, #tpu.memory_space<vmem>>, vector<1x16xf32>
    tpu.vector_store %arg12[%c0_73, %c240], %84 {strides = array<i32>} : memref<1x256xf32, #tpu.memory_space<vmem>>, vector<1x16xf32>,
    %c0_74 = arith.constant 0 : index
    %c0_75 = arith.constant 0 : index
    %86 = vector.load %arg12[%c0_74, %c0_75] : memref<1x256xf32, #tpu.memory_space<vmem>>, vector<1x256xf32>
    %c0_76 = arith.constant 0 : index
    %c0_77 = arith.constant 0 : index
    %87 = vector.load %arg6[%c0_76, %c0_77] : memref<256x5xf32, #tpu.memory_space<vmem>>, vector<256x5xf32>
    %cst_78 = arith.constant dense<0.000000e+00> : vector<1x5xf32>
    %88 = tpu.matmul %86, %87, %cst_78 {dimension_numbers = #tpu.dot_dimension_numbers<[1], [0], [0], [1], [0, 0, 1, 1], [], []>} : vector<1x256xf32>, vector<256x5xf32>, vector<1x5xf32> -> vector<1x5xf32>
    %c0_79 = arith.constant 0 : index
    %c0_80 = arith.constant 0 : index
    %89 = vector.load %arg7[%c0_79, %c0_80] : memref<1x5xf32, #tpu.memory_space<vmem>>, vector<1x5xf32>
    %90 = arith.addf %88, %89 : vector<1x5xf32>
    %c0_81 = arith.constant 0 : index
    %c0_82 = arith.constant 0 : index
    %c0_83 = arith.constant 0 : index
    %91 = vector.load %arg8[%c0_81, %c0_82, %c0_83] : memref<1x1x5xf32, #tpu.memory_space<vmem>>, vector<1x1x5xf32>
    %92 = vector.shape_cast %91 : vector<1x1x5xf32> to vector<1x5xf32>
    %93 = vector.shape_cast %90 : vector<1x5xf32> to vector<1x1x5xf32>
    tpu.vector_store %arg8[%c0_81, %c0_82, %c0_83], %93 {strides = array<i32>} : memref<1x1x5xf32, #tpu.memory_space<vmem>>, vector<1x1x5xf32>,
    return
  }
  func.func @transform_0(%arg0: i32) -> (i32, i32, i32) {
    %c0_i32 = arith.constant 0 : i32
    %c0_i32_0 = arith.constant 0 : i32
    %c0_i32_1 = arith.constant 0 : i32
    return %arg0, %c0_i32, %c0_i32_0 : i32, i32, i32
  }
  func.func @transform_1(%arg0: i32) -> (i32, i32) {
    %c0_i32 = arith.constant 0 : i32
    %c0_i32_0 = arith.constant 0 : i32
    %c0_i32_1 = arith.constant 0 : i32
    return %c0_i32, %c0_i32_0 : i32, i32
  }
  func.func @transform_2(%arg0: i32) -> (i32, i32) {
    %c0_i32 = arith.constant 0 : i32
    %c0_i32_0 = arith.constant 0 : i32
    %c0_i32_1 = arith.constant 0 : i32
    return %c0_i32, %c0_i32_0 : i32, i32
  }
  func.func @transform_3(%arg0: i32) -> (i32, i32) {
    %c0_i32 = arith.constant 0 : i32
    %c0_i32_0 = arith.constant 0 : i32
    %c0_i32_1 = arith.constant 0 : i32
    return %c0_i32, %c0_i32_0 : i32, i32
  }
  func.func @transform_4(%arg0: i32) -> (i32, i32) {
    %c0_i32 = arith.constant 0 : i32
    %c0_i32_0 = arith.constant 0 : i32
    %c0_i32_1 = arith.constant 0 : i32
    return %c0_i32, %c0_i32_0 : i32, i32
  }
  func.func @transform_5(%arg0: i32) -> (i32, i32) {
    %c0_i32 = arith.constant 0 : i32
    %c0_i32_0 = arith.constant 0 : i32
    %c0_i32_1 = arith.constant 0 : i32
    return %c0_i32, %c0_i32_0 : i32, i32
  }
  func.func @transform_6(%arg0: i32) -> (i32, i32) {
    %c0_i32 = arith.constant 0 : i32
    %c0_i32_0 = arith.constant 0 : i32
    %c0_i32_1 = arith.constant 0 : i32
    return %c0_i32, %c0_i32_0 : i32, i32
  }
  func.func @transform_7(%arg0: i32) -> (i32, i32, i32) {
    %c0_i32 = arith.constant 0 : i32
    %c0_i32_0 = arith.constant 0 : i32
    %c0_i32_1 = arith.constant 0 : i32
    return %arg0, %c0_i32, %c0_i32_0 : i32, i32, i32
  }
}

</mosaic_0001>

<llo_original>
// kernel: my_network_cnn_forward.1
$region0: #{my_network_cnn_forward.1}
  #allocation0 [shape = 'u32[]', space=smem, size = 0x4, offset = 0x4, fixed_abs, tag = 'smem constant byte address 0x4 - core index']
  #allocation1 [shape = 'u32[144,128]{1,0:T(1,128)}', space=vmem, size = 0x12000, scoped, tag = 'internal scratch']
  #allocation2 [shape = 'f32[66,16]{1,0:T(8,128)}', space=vmem, size = 0x9000, scoped, tag = 'scratch operand']
  #allocation3 [shape = 'f32[64,48]{1,0:T(8,128)}', space=vmem, size = 0x8000, scoped, tag = 'scratch operand']
  #allocation4 [shape = 'f32[64,16]{1,0:T(8,128)}', space=vmem, size = 0x8000, scoped, tag = 'scratch operand']
  #allocation5 [shape = 'f32[1,256]{1,0:T(1,128)}', space=vmem, size = 0x400, scoped, tag = 'scratch operand']
  %s0 = inlined_call_operand.vmem [shape: f32[2,64,1], index: 0, kind: input, shape index: {}]
  %s1 = inlined_call_operand.vmem [shape: f32[3,8], index: 1, kind: input, shape index: {}]
  %s2 = inlined_call_operand.vmem [shape: f32[1,8], index: 2, kind: input, shape index: {}]
  %s3 = inlined_call_operand.vmem [shape: f32[24,16], index: 3, kind: input, shape index: {}]
  %s4 = inlined_call_operand.vmem [shape: f32[1,16], index: 4, kind: input, shape index: {}]
  %s5 = inlined_call_operand.vmem [shape: f32[256,5], index: 5, kind: input, shape index: {}]
  %s6 = inlined_call_operand.vmem [shape: f32[1,5], index: 6, kind: input, shape index: {}]
  %s7 = inlined_call_operand.hbm [shape: f32[2,1,5], index: 7, kind: output, shape index: {}]
  %s8 = sld [smem:[#allocation0]]
  $region61: #{my_network_cnn_forward.1} parent=0
    _
  %s10 = ssub.s32 1, %s8
  %s11 = scalar_select 0, %s10, %s8
  $region1: #{my_network_cnn_forward.1} parent=0
    #allocation6 [shape = 'u8[1024]{0}', space=vmem, size = 0x400, scoped, tag = 'output window, operand 0']
    #allocation7 [shape = 's32[2]{0}', space=sflag, size = 0x8, scoped, tag = 'scoped memory for my_network_cnn_forward.1']
    %12 = vsyncpa [#allocation7], 0
    %s13 = scalar_lea.sflag [#allocation7], 1
    %14 = vsyncpa %s13, 0
    loop: start=0, step=1, limit=4
    $region2: #{my_network_cnn_forward.1} parent=1 // loop_pre_header
      _
    $region3: #{my_network_cnn_forward.1} parent=1 // loop_header
      %s16 = sphi 0, %s20
      %p17 = scmp.ge.s32.totalorder %s16, 4
      %s26 = sphi 0, %s28
      %s29 = sphi 0, %s26
      %s30 = sphi 0, %s29
      %s46 = sphi 0, %s30
      %s50 = sphi 0, %s50
      %s52 = sphi 0, %s50
      %s53 = sphi 0, %s52
      %s67 = sphi 0, %s53
      %s71 = sphi 0, %s71
      %s73 = sphi 0, %s71
      %s74 = sphi 0, %s73
      %s88 = sphi 0, %s74
      %s92 = sphi 0, %s92
      %s94 = sphi 0, %s92
      %s95 = sphi 0, %s94
      %s109 = sphi 0, %s95
      %s113 = sphi 0, %s113
      %s115 = sphi 0, %s113
      %s116 = sphi 0, %s115
      %s130 = sphi 0, %s116
      %s134 = sphi 0, %s134
      %s136 = sphi 0, %s134
      %s137 = sphi 0, %s136
      %s151 = sphi 0, %s137
      %s155 = sphi 0, %s155
      %s157 = sphi 0, %s155
      %s158 = sphi 0, %s157
      %s172 = sphi 0, %s158
      %s178 = sphi 0, %s180
      %s181 = sphi 0, %s178
      %s182 = sphi 0, %s181
      %s198 = sphi 0, %s182
    $region4: #{my_network_cnn_forward.1} parent=1 // loop_header_branch
      %19 = sbr.rel (%p17) target = $region8
    $region5: #{my_network_cnn_forward.1} parent=1 // loop_body
      %s21 = ssub.s32 %s16, 1
      %s22 = ssub.s32 %s16, 2
      %s23 = sadd.s32 %s16, 1
      %s24 = ssub.s32 %s16, %s23
      %p25 = scmp.eq.s32.totalorder %s24, 0
      %s27 = sadd.s32 %s26, 1
      %s28 = scalar_select %p25, %s26, %s27
      %p31 = pneg %p25
      %p32 = scmp.eq.s32.totalorder %s16, 1
      %p33 = por %p31, %p32
      %p34 = scmp.ne.s32.totalorder %s26, %s29
      %p35 = scmp.eq.s32.totalorder %s16, 0
      %p36 = por %p34, %p35
      %p37 = scmp.ne.s32.totalorder %s26, %s29
      %p38 = scmp.eq.s32.totalorder %s21, 1
      %p39 = por %p37, %p38
      %p40 = scmp.ne.s32.totalorder %s29, %s30
      %p41 = scmp.eq.s32.totalorder %s21, 0
      %p42 = por %p40, %p41
      %p43 = scmp.ne.s32.totalorder %s29, %s30
      %p44 = scmp.eq.s32.totalorder %s22, 1
      %p45 = por %p43, %p44
      %p47 = scmp.ne.s32.totalorder %s30, %s46
      %p48 = scmp.eq.s32.totalorder %s22, 0
      %p49 = por %p47, %p48
      %s51 = sadd.s32 %s50, 1
      %p54 = scmp.eq.s32.totalorder %s16, 1
      %p55 = scmp.ne.s32.totalorder %s50, %s52
      %p56 = scmp.eq.s32.totalorder %s16, 0
      %p57 = por %p55, %p56
      %p58 = scmp.ne.s32.totalorder %s50, %s52
      %p59 = scmp.eq.s32.totalorder %s21, 1
      %p60 = por %p58, %p59
      %p61 = scmp.ne.s32.totalorder %s52, %s53
      %p62 = scmp.eq.s32.totalorder %s21, 0
      %p63 = por %p61, %p62
      %p64 = scmp.ne.s32.totalorder %s52, %s53
      %p65 = scmp.eq.s32.totalorder %s22, 1
      %p66 = por %p64, %p65
      %p68 = scmp.ne.s32.totalorder %s53, %s67
      %p69 = scmp.eq.s32.totalorder %s22, 0
      %p70 = por %p68, %p69
      %s72 = sadd.s32 %s71, 1
      %p75 = scmp.eq.s32.totalorder %s16, 1
      %p76 = scmp.ne.s32.totalorder %s71, %s73
      %p77 = scmp.eq.s32.totalorder %s16, 0
      %p78 = por %p76, %p77
      %p79 = scmp.ne.s32.totalorder %s71, %s73
      %p80 = scmp.eq.s32.totalorder %s21, 1
      %p81 = por %p79, %p80
      %p82 = scmp.ne.s32.totalorder %s73, %s74
      %p83 = scmp.eq.s32.totalorder %s21, 0
      %p84 = por %p82, %p83
      %p85 = scmp.ne.s32.totalorder %s73, %s74
      %p86 = scmp.eq.s32.totalorder %s22, 1
      %p87 = por %p85, %p86
      %p89 = scmp.ne.s32.totalorder %s74, %s88
      %p90 = scmp.eq.s32.totalorder %s22, 0
      %p91 = por %p89, %p90
      %s93 = sadd.s32 %s92, 1
      %p96 = scmp.eq.s32.totalorder %s16, 1
      %p97 = scmp.ne.s32.totalorder %s92, %s94
      %p98 = scmp.eq.s32.totalorder %s16, 0
      %p99 = por %p97, %p98
      %p100 = scmp.ne.s32.totalorder %s92, %s94
      %p101 = scmp.eq.s32.totalorder %s21, 1
      %p102 = por %p100, %p101
      %p103 = scmp.ne.s32.totalorder %s94, %s95
      %p104 = scmp.eq.s32.totalorder %s21, 0
      %p105 = por %p103, %p104
      %p106 = scmp.ne.s32.totalorder %s94, %s95
      %p107 = scmp.eq.s32.totalorder %s22, 1
      %p108 = por %p106, %p107
      %p110 = scmp.ne.s32.totalorder %s95, %s109
      %p111 = scmp.eq.s32.totalorder %s22, 0
      %p112 = por %p110, %p111
      %s114 = sadd.s32 %s113, 1
      %p117 = scmp.eq.s32.totalorder %s16, 1
      %p118 = scmp.ne.s32.totalorder %s113, %s115
      %p119 = scmp.eq.s32.totalorder %s16, 0
      %p120 = por %p118, %p119
      %p121 = scmp.ne.s32.totalorder %s113, %s115
      %p122 = scmp.eq.s32.totalorder %s21, 1
      %p123 = por %p121, %p122
      %p124 = scmp.ne.s32.totalorder %s115, %s116
      %p125 = scmp.eq.s32.totalorder %s21, 0
      %p126 = por %p124, %p125
      %p127 = scmp.ne.s32.totalorder %s115, %s116
      %p128 = scmp.eq.s32.totalorder %s22, 1
      %p129 = por %p127, %p128
      %p131 = scmp.ne.s32.totalorder %s116, %s130
      %p132 = scmp.eq.s32.totalorder %s22, 0
      %p133 = por %p131, %p132
      %s135 = sadd.s32 %s134, 1
      %p138 = scmp.eq.s32.totalorder %s16, 1
      %p139 = scmp.ne.s32.totalorder %s134, %s136
      %p140 = scmp.eq.s32.totalorder %s16, 0
      %p141 = por %p139, %p140
      %p142 = scmp.ne.s32.totalorder %s134, %s136
      %p143 = scmp.eq.s32.totalorder %s21, 1
      %p144 = por %p142, %p143
      %p145 = scmp.ne.s32.totalorder %s136, %s137
      %p146 = scmp.eq.s32.totalorder %s21, 0
      %p147 = por %p145, %p146
      %p148 = scmp.ne.s32.totalorder %s136, %s137
      %p149 = scmp.eq.s32.totalorder %s22, 1
      %p150 = por %p148, %p149
      %p152 = scmp.ne.s32.totalorder %s137, %s151
      %p153 = scmp.eq.s32.totalorder %s22, 0
      %p154 = por %p152, %p153
      %s156 = sadd.s32 %s155, 1
      %p159 = scmp.eq.s32.totalorder %s16, 1
      %p160 = scmp.ne.s32.totalorder %s155, %s157
      %p161 = scmp.eq.s32.totalorder %s16, 0
      %p162 = por %p160, %p161
      %p163 = scmp.ne.s32.totalorder %s155, %s157
      %p164 = scmp.eq.s32.totalorder %s21, 1
      %p165 = por %p163, %p164
      %p166 = scmp.ne.s32.totalorder %s157, %s158
      %p167 = scmp.eq.s32.totalorder %s21, 0
      %p168 = por %p166, %p167
      %p169 = scmp.ne.s32.totalorder %s157, %s158
      %p170 = scmp.eq.s32.totalorder %s22, 1
      %p171 = por %p169, %p170
      %p173 = scmp.ne.s32.totalorder %s158, %s172
      %p174 = scmp.eq.s32.totalorder %s22, 0
      %p175 = por %p173, %p174
      %s176 = ssub.s32 %s16, %s23
      %p177 = scmp.eq.s32.totalorder %s176, 0
      %s179 = sadd.s32 %s178, 1
      %s180 = scalar_select %p177, %s178, %s179
      %p183 = pneg %p177
      %p184 = scmp.eq.s32.totalorder %s16, 1
      %p185 = por %p183, %p184
      %p186 = scmp.ne.s32.totalorder %s178, %s181
      %p187 = scmp.eq.s32.totalorder %s16, 0
      %p188 = por %p186, %p187
      %p189 = scmp.ne.s32.totalorder %s178, %s181
      %p190 = scmp.eq.s32.totalorder %s21, 1
      %p191 = por %p189, %p190
      %p192 = scmp.ne.s32.totalorder %s181, %s182
      %p193 = scmp.eq.s32.totalorder %s21, 0
      %p194 = por %p192, %p193
      %p195 = scmp.ne.s32.totalorder %s181, %s182
      %p196 = scmp.eq.s32.totalorder %s22, 1
      %p197 = por %p195, %p196
      %p199 = scmp.ne.s32.totalorder %s182, %s198
      %p200 = scmp.eq.s32.totalorder %s22, 0
      %p201 = por %p199, %p200
      %p202 = scmp.le.s32.totalorder 1, %s16
      %p203 = scmp.lt.s32.totalorder %s16, 3
      %p204 = pnand %p202, %p203
      %p205 = pneg %p204
      // Predicated region
      $region9: #{my_network_cnn_forward.1} parent=5 // pred_check
        _
      $region10: #{my_network_cnn_forward.1} parent=5 // pred_check_branch
        %207 = sbr.rel (%p204) target = $region12
      $region11: #{my_network_cnn_forward.1} parent=5 // pred_region
        %s208 = ssub.s32 %s16, 1
        // Predicated region
        $region13: #{my_network_cnn_forward.1} parent=11 // pred_check
          %p209 = pneg %p63
        $region14: #{my_network_cnn_forward.1} parent=11 // pred_check_branch
          %211 = sbr.rel (%p209) target = $region16
        $region15: #{my_network_cnn_forward.1} parent=11 // pred_region
          _
        $region16: #{my_network_cnn_forward.1} parent=11 // pred_fallthru
          _
        // Predicated region
        $region17: #{my_network_cnn_forward.1} parent=11 // pred_check
          %p212 = pneg %p84
        $region18: #{my_network_cnn_forward.1} parent=11 // pred_check_branch
          %214 = sbr.rel (%p212) target = $region20
        $region19: #{my_network_cnn_forward.1} parent=11 // pred_region
          _
        $region20: #{my_network_cnn_forward.1} parent=11 // pred_fallthru
          _
        // Predicated region
        $region21: #{my_network_cnn_forward.1} parent=11 // pred_check
          %p215 = pneg %p105
        $region22: #{my_network_cnn_forward.1} parent=11 // pred_check_branch
          %217 = sbr.rel (%p215) target = $region24
        $region23: #{my_network_cnn_forward.1} parent=11 // pred_region
          _
        $region24: #{my_network_cnn_forward.1} parent=11 // pred_fallthru
          _
        // Predicated region
        $region25: #{my_network_cnn_forward.1} parent=11 // pred_check
          %p218 = pneg %p126
        $region26: #{my_network_cnn_forward.1} parent=11 // pred_check_branch
          %220 = sbr.rel (%p218) target = $region28
        $region27: #{my_network_cnn_forward.1} parent=11 // pred_region
          _
        $region28: #{my_network_cnn_forward.1} parent=11 // pred_fallthru
          _
        // Predicated region
        $region29: #{my_network_cnn_forward.1} parent=11 // pred_check
          %p221 = pneg %p147
        $region30: #{my_network_cnn_forward.1} parent=11 // pred_check_branch
          %223 = sbr.rel (%p221) target = $region32
        $region31: #{my_network_cnn_forward.1} parent=11 // pred_region
          _
        $region32: #{my_network_cnn_forward.1} parent=11 // pred_fallthru
          _
        // Predicated region
        $region33: #{my_network_cnn_forward.1} parent=11 // pred_check
          %p224 = pneg %p168
        $region34: #{my_network_cnn_forward.1} parent=11 // pred_check_branch
          %226 = sbr.rel (%p224) target = $region36
        $region35: #{my_network_cnn_forward.1} parent=11 // pred_region
          _
        $region36: #{my_network_cnn_forward.1} parent=11 // pred_fallthru
          _
      $region12: #{my_network_cnn_forward.1} parent=5 // pred_fallthru
        _
      %p227 = scmp.lt.s32.totalorder %s16, 2
      // Predicated region
      $region37: #{my_network_cnn_forward.1} parent=5 // pred_check
        %p228 = pneg %p227
      $region38: #{my_network_cnn_forward.1} parent=5 // pred_check_branch
        %230 = sbr.rel (%p228) target = $region40
      $region39: #{my_network_cnn_forward.1} parent=5 // pred_region
        // Predicated region
        $region41: #{my_network_cnn_forward.1} parent=39 // pred_check
          %p231 = pneg %p36
        $region42: #{my_network_cnn_forward.1} parent=39 // pred_check_branch
          %233 = sbr.rel (%p231) target = $region44
        $region43: #{my_network_cnn_forward.1} parent=39 // pred_region
          %p234 = scmp.lt.s32.totalorder %s16, 1
          %s235 = scalar_select %p234, %s16, 1
          %s236 = smul.addr %s235, 8
          %s237 = smul.addr %s236, 8
          %s238 = scalar_lea.vmem %s0, %s237
        $region44: #{my_network_cnn_forward.1} parent=39 // pred_fallthru
          _
      $region40: #{my_network_cnn_forward.1} parent=5 // pred_fallthru
        _
      %p239 = scmp.le.s32.totalorder 1, %s16
      %p240 = scmp.lt.s32.totalorder %s16, 3
      %p241 = pnand %p239, %p240
      %p242 = pneg %p241
      // Predicated region
      $region45: #{my_network_cnn_forward.1} parent=5 // pred_check
        _
      $region46: #{my_network_cnn_forward.1} parent=5 // pred_check_branch
        %244 = sbr.rel (%p241) target = $region48
      $region47: #{my_network_cnn_forward.1} parent=5 // pred_region
        %s245 = ssub.s32 %s16, 1
        %p246 = scmp.lt.s32.totalorder %s21, 1
        %s247 = scalar_select %p246, %s21, 1
        %s248 = smul.addr %s247, 8
        %s249 = smul.addr %s248, 8
        %s250 = scalar_lea.vmem %s0, %s249
        %p251 = pneg %p42
        %p252 = pneg %p39
        %p253 = pneg %p63
        %p254 = pneg %p60
        %p255 = pneg %p84
        %p256 = pneg %p81
        %p257 = pneg %p105
        %p258 = pneg %p102
        %p259 = pneg %p126
        %p260 = pneg %p123
        %p261 = pneg %p147
        %p262 = pneg %p144
        %p263 = pneg %p168
        %p264 = pneg %p165
        %p265 = pneg %p194
        %p266 = pneg %p191
        %s267 = sand.u32 %s181, 1
        %s268 = scalar_lea.sflag [#allocation7], %s267
        %s269 = sand.u32 %s181, 1
        %s270 = scalar_lea.vmem [#allocation6], %s269
        %p271 = scmp.lt.s32.totalorder %s21, 1
        %s272 = scalar_select %p271, %s21, 1
        %s273 = smul.addr %s272, 8
        %s274 = smul.addr %s273, 8
        %s275 = scalar_lea.vmem %s0, %s274
        %v276 = vld [vmem:[%s275] sm:$0xff]
        %v277 = vld [vmem:[%s275 + $0x8] sm:$0xff]
        %v278 = vld [vmem:[%s275 + $0x10] sm:$0xff]
        %v279 = vld [vmem:[%s275 + $0x18] sm:$0xff]
        %v280 = vld [vmem:[%s275 + $0x20] sm:$0xff]
        %v281 = vld [vmem:[%s275 + $0x28] sm:$0xff]
        %v282 = vld [vmem:[%s275 + $0x30] sm:$0xff]
        %v283 = vld [vmem:[%s275 + $0x38] sm:$0xff]
        %vm284 = vcmask 0
        %285 = vst.msk [vmem:[#allocation2] sm:$0x1] %vm284, 0.0
        %286 = vst.msk [vmem:[#allocation2 + $0x41] sm:$0x1] %vm284, 0.0
        %vm287 = vcmask 7168
        %288 = vst.msk [vmem:[#allocation2 + $0x1] sm:$0xff] %vm287, %v276
        %289 = vst.msk [vmem:[#allocation2 + $0x9] sm:$0xff] %vm287, %v277
        %290 = vst.msk [vmem:[#allocation2 + $0x11] sm:$0xff] %vm287, %v278
        %291 = vst.msk [vmem:[#allocation2 + $0x19] sm:$0xff] %vm287, %v279
        %292 = vst.msk [vmem:[#allocation2 + $0x21] sm:$0xff] %vm287, %v280
        %293 = vst.msk [vmem:[#allocation2 + $0x29] sm:$0xff] %vm287, %v281
        %294 = vst.msk [vmem:[#allocation2 + $0x31] sm:$0xff] %vm287, %v282
        %295 = vst.msk [vmem:[#allocation2 + $0x39] sm:$0xff] %vm287, %v283
        %v296 = vld [vmem:[#allocation2] sm:$0xff]
        %v297 = vld [vmem:[#allocation2 + $0x8] sm:$0xff]
        %v298 = vld [vmem:[#allocation2 + $0x10] sm:$0xff]
        %v299 = vld [vmem:[#allocation2 + $0x18] sm:$0xff]
        %v300 = vld [vmem:[#allocation2 + $0x20] sm:$0xff]
        %v301 = vld [vmem:[#allocation2 + $0x28] sm:$0xff]
        %v302 = vld [vmem:[#allocation2 + $0x30] sm:$0xff]
        %v303 = vld [vmem:[#allocation2 + $0x38] sm:$0xff]
        %v304 = vld [vmem:[#allocation2 + $0x1] sm:$0xff]
        %v305 = vld [vmem:[#allocation2 + $0x9] sm:$0xff]
        %v306 = vld [vmem:[#allocation2 + $0x11] sm:$0xff]
        %v307 = vld [vmem:[#allocation2 + $0x19] sm:$0xff]
        %v308 = vld [vmem:[#allocation2 + $0x21] sm:$0xff]
        %v309 = vld [vmem:[#allocation2 + $0x29] sm:$0xff]
        %v310 = vld [vmem:[#allocation2 + $0x31] sm:$0xff]
        %v311 = vld [vmem:[#allocation2 + $0x39] sm:$0xff]
        %v312 = vld [vmem:[#allocation2 + $0x2] sm:$0xff]
        %v313 = vld [vmem:[#allocation2 + $0xa] sm:$0xff]
        %v314 = vld [vmem:[#allocation2 + $0x12] sm:$0xff]
        %v315 = vld [vmem:[#allocation2 + $0x1a] sm:$0xff]
        %v316 = vld [vmem:[#allocation2 + $0x22] sm:$0xff]
        %v317 = vld [vmem:[#allocation2 + $0x2a] sm:$0xff]
        %v318 = vld [vmem:[#allocation2 + $0x32] sm:$0xff]
        %v319 = vld [vmem:[#allocation2 + $0x3a] sm:$0xff]
        %v320 = vld [vmem:[%s1] sm:$0x1]
        %322 = vset.pattern.permute.xlu0 0
        %323 = vperm.xlu0 %322, %v296
        %v324 = vpop.permute.xlu0 %323
        %327 = vset.pattern.permute.xlu0 0
        %328 = vperm.xlu0 %327, %v297
        %v329 = vpop.permute.xlu0 %328
        %332 = vset.pattern.permute.xlu0 0
        %333 = vperm.xlu0 %332, %v298
        %v334 = vpop.permute.xlu0 %333
        %337 = vset.pattern.permute.xlu0 0
        %338 = vperm.xlu0 %337, %v299
        %v339 = vpop.permute.xlu0 %338
        %342 = vset.pattern.permute.xlu0 0
        %343 = vperm.xlu0 %342, %v300
        %v344 = vpop.permute.xlu0 %343
        %347 = vset.pattern.permute.xlu0 0
        %348 = vperm.xlu0 %347, %v301
        %v349 = vpop.permute.xlu0 %348
        %352 = vset.pattern.permute.xlu0 0
        %353 = vperm.xlu0 %352, %v302
        %v354 = vpop.permute.xlu0 %353
        %357 = vset.pattern.permute.xlu0 0
        %358 = vperm.xlu0 %357, %v303
        %v359 = vpop.permute.xlu0 %358
        %v361 = vlaneseq
        %v362 = vshrl.u32 %v361, 7
        %v363 = vsub.s32 0, %v362
        %v364 = vrot.slane %v320, %v363
        %v365 = vmul.f32 %v324, %v364
        %v366 = vmul.f32 %v329, %v364
        %v367 = vmul.f32 %v334, %v364
        %v368 = vmul.f32 %v339, %v364
        %v369 = vmul.f32 %v344, %v364
        %v370 = vmul.f32 %v349, %v364
        %v371 = vmul.f32 %v354, %v364
        %v372 = vmul.f32 %v359, %v364
        %v373 = vld [vmem:[%s1 + $0x1] sm:$0x1]
        %375 = vset.pattern.permute.xlu0 0
        %376 = vperm.xlu0 %375, %v304
        %v377 = vpop.permute.xlu0 %376
        %380 = vset.pattern.permute.xlu0 0
        %381 = vperm.xlu0 %380, %v305
        %v382 = vpop.permute.xlu0 %381
        %385 = vset.pattern.permute.xlu0 0
        %386 = vperm.xlu0 %385, %v306
        %v387 = vpop.permute.xlu0 %386
        %390 = vset.pattern.permute.xlu0 0
        %391 = vperm.xlu0 %390, %v307
        %v392 = vpop.permute.xlu0 %391
        %395 = vset.pattern.permute.xlu0 0
        %396 = vperm.xlu0 %395, %v308
        %v397 = vpop.permute.xlu0 %396
        %400 = vset.pattern.permute.xlu0 0
        %401 = vperm.xlu0 %400, %v309
        %v402 = vpop.permute.xlu0 %401
        %405 = vset.pattern.permute.xlu0 0
        %406 = vperm.xlu0 %405, %v310
        %v407 = vpop.permute.xlu0 %406
        %410 = vset.pattern.permute.xlu0 0
        %411 = vperm.xlu0 %410, %v311
        %v412 = vpop.permute.xlu0 %411
        %v414 = vlaneseq
        %v415 = vshrl.u32 %v414, 7
        %v416 = vsub.s32 0, %v415
        %v417 = vrot.slane %v373, %v416
        %v418 = vmul.f32 %v377, %v417
        %v419 = vmul.f32 %v382, %v417
        %v420 = vmul.f32 %v387, %v417
        %v421 = vmul.f32 %v392, %v417
        %v422 = vmul.f32 %v397, %v417
        %v423 = vmul.f32 %v402, %v417
        %v424 = vmul.f32 %v407, %v417
        %v425 = vmul.f32 %v412, %v417
        %v426 = vadd.f32 %v365, %v418
        %v427 = vadd.f32 %v366, %v419
        %v428 = vadd.f32 %v367, %v420
        %v429 = vadd.f32 %v368, %v421
        %v430 = vadd.f32 %v369, %v422
        %v431 = vadd.f32 %v370, %v423
        %v432 = vadd.f32 %v371, %v424
        %v433 = vadd.f32 %v372, %v425
        %v434 = vld [vmem:[%s1 + $0x2] sm:$0x1]
        %436 = vset.pattern.permute.xlu0 0
        %437 = vperm.xlu0 %436, %v312
        %v438 = vpop.permute.xlu0 %437
        %441 = vset.pattern.permute.xlu0 0
        %442 = vperm.xlu0 %441, %v313
        %v443 = vpop.permute.xlu0 %442
        %446 = vset.pattern.permute.xlu0 0
        %447 = vperm.xlu0 %446, %v314
        %v448 = vpop.permute.xlu0 %447
        %451 = vset.pattern.permute.xlu0 0
        %452 = vperm.xlu0 %451, %v315
        %v453 = vpop.permute.xlu0 %452
        %456 = vset.pattern.permute.xlu0 0
        %457 = vperm.xlu0 %456, %v316
        %v458 = vpop.permute.xlu0 %457
        %461 = vset.pattern.permute.xlu0 0
        %462 = vperm.xlu0 %461, %v317
        %v463 = vpop.permute.xlu0 %462
        %466 = vset.pattern.permute.xlu0 0
        %467 = vperm.xlu0 %466, %v318
        %v468 = vpop.permute.xlu0 %467
        %471 = vset.pattern.permute.xlu0 0
        %472 = vperm.xlu0 %471, %v319
        %v473 = vpop.permute.xlu0 %472
        %v475 = vlaneseq
        %v476 = vshrl.u32 %v475, 7
        %v477 = vsub.s32 0, %v476
        %v478 = vrot.slane %v434, %v477
        %v479 = vmul.f32 %v438, %v478
        %v480 = vmul.f32 %v443, %v478
        %v481 = vmul.f32 %v448, %v478
        %v482 = vmul.f32 %v453, %v478
        %v483 = vmul.f32 %v458, %v478
        %v484 = vmul.f32 %v463, %v478
        %v485 = vmul.f32 %v468, %v478
        %v486 = vmul.f32 %v473, %v478
        %v487 = vadd.f32 %v426, %v479
        %v488 = vadd.f32 %v427, %v480
        %v489 = vadd.f32 %v428, %v481
        %v490 = vadd.f32 %v429, %v482
        %v491 = vadd.f32 %v430, %v483
        %v492 = vadd.f32 %v431, %v484
        %v493 = vadd.f32 %v432, %v485
        %v494 = vadd.f32 %v433, %v486
        %v495 = vld [vmem:[%s2] sm:$0x1]
        %v497 = vlaneseq
        %v498 = vshrl.u32 %v497, 7
        %v499 = vsub.s32 0, %v498
        %v500 = vrot.slane %v495, %v499
        %v502 = vadd.f32 %v487, %v500
        %v503 = vadd.f32 %v488, %v500
        %v504 = vadd.f32 %v489, %v500
        %v505 = vadd.f32 %v490, %v500
        %v506 = vadd.f32 %v491, %v500
        %v507 = vadd.f32 %v492, %v500
        %v508 = vadd.f32 %v493, %v500
        %v509 = vadd.f32 %v494, %v500
        %v510 = vmax.f32 %v502, 0.0
        %v511 = vmax.f32 %v503, 0.0
        %v512 = vmax.f32 %v504, 0.0
        %v513 = vmax.f32 %v505, 0.0
        %v514 = vmax.f32 %v506, 0.0
        %v515 = vmax.f32 %v507, 0.0
        %v516 = vmax.f32 %v508, 0.0
        %v517 = vmax.f32 %v509, 0.0
        %vm518 = vcmask 64512
        %519 = vst.msk [vmem:[#allocation4] sm:$0xff] %vm518, %v510
        %520 = vst.msk [vmem:[#allocation4 + $0x8] sm:$0xff] %vm518, %v511
        %521 = vst.msk [vmem:[#allocation4 + $0x10] sm:$0xff] %vm518, %v512
        %522 = vst.msk [vmem:[#allocation4 + $0x18] sm:$0xff] %vm518, %v513
        %523 = vst.msk [vmem:[#allocation4 + $0x20] sm:$0xff] %vm518, %v514
        %524 = vst.msk [vmem:[#allocation4 + $0x28] sm:$0xff] %vm518, %v515
        %525 = vst.msk [vmem:[#allocation4 + $0x30] sm:$0xff] %vm518, %v516
        %526 = vst.msk [vmem:[#allocation4 + $0x38] sm:$0xff] %vm518, %v517
        %v527 = vld [vmem:[#allocation4] ss:$2 sm:$0xff]
        %s528 = scalar_lea.vmem [#allocation4], 16
        %v529 = vld [vmem:[%s528] ss:$2 sm:$0xff]
        %s530 = scalar_lea.vmem [#allocation4], 32
        %v531 = vld [vmem:[%s530] ss:$2 sm:$0xff]
        %s532 = scalar_lea.vmem [#allocation4], 48
        %v533 = vld [vmem:[%s532] ss:$2 sm:$0xff]
        %s534 = scalar_lea.vmem [#allocation4], 1
        %v535 = vld [vmem:[%s534] ss:$2 sm:$0xff]
        %s536 = scalar_lea.vmem [#allocation4], 17
        %v537 = vld [vmem:[%s536] ss:$2 sm:$0xff]
        %s538 = scalar_lea.vmem [#allocation4], 33
        %v539 = vld [vmem:[%s538] ss:$2 sm:$0xff]
        %s540 = scalar_lea.vmem [#allocation4], 49
        %v541 = vld [vmem:[%s540] ss:$2 sm:$0xff]
        %v542 = vmax.f32 %v527, %v535
        %v543 = vmax.f32 %v529, %v537
        %v544 = vmax.f32 %v531, %v539
        %v545 = vmax.f32 %v533, %v541
        %vm546 = vcmask 57344
        %547 = vst.msk [vmem:[#allocation2] sm:$0x1] %vm546, 0.0
        %548 = vst.msk [vmem:[#allocation2 + $0x21] sm:$0x1] %vm546, 0.0
        %549 = vst.msk [vmem:[#allocation2 + $0x1] sm:$0xff] %vm518, %v542
        %550 = vst.msk [vmem:[#allocation2 + $0x9] sm:$0xff] %vm518, %v543
        %551 = vst.msk [vmem:[#allocation2 + $0x11] sm:$0xff] %vm518, %v544
        %552 = vst.msk [vmem:[#allocation2 + $0x19] sm:$0xff] %vm518, %v545
        %v553 = vld [vmem:[#allocation2] sm:$0xff]
        %v554 = vld [vmem:[#allocation2 + $0x8] sm:$0xff]
        %v555 = vld [vmem:[#allocation2 + $0x10] sm:$0xff]
        %v556 = vld [vmem:[#allocation2 + $0x18] sm:$0xff]
        %v557 = vld [vmem:[#allocation2 + $0x1] sm:$0xff]
        %v558 = vld [vmem:[#allocation2 + $0x9] sm:$0xff]
        %v559 = vld [vmem:[#allocation2 + $0x11] sm:$0xff]
        %v560 = vld [vmem:[#allocation2 + $0x19] sm:$0xff]
        %v561 = vld [vmem:[#allocation2 + $0x2] sm:$0xff]
        %v562 = vld [vmem:[#allocation2 + $0xa] sm:$0xff]
        %v563 = vld [vmem:[#allocation2 + $0x12] sm:$0xff]
        %v564 = vld [vmem:[#allocation2 + $0x1a] sm:$0xff]
        %565 = vst.msk [vmem:[#allocation3] sm:$0xff] %vm518, %v553
        %566 = vst.msk [vmem:[#allocation3 + $0x8] sm:$0xff] %vm518, %v554
        %567 = vst.msk [vmem:[#allocation3 + $0x10] sm:$0xff] %vm518, %v555
        %568 = vst.msk [vmem:[#allocation3 + $0x18] sm:$0xff] %vm518, %v556
        %573 = vrot.lane.b32.xlu0 %v557, 8
        %v574 = vpop.permute.xlu0 %573
        %575 = vrot.lane.b32.xlu0 %v558, 8
        %v576 = vpop.permute.xlu0 %575
        %577 = vrot.lane.b32.xlu0 %v559, 8
        %v578 = vpop.permute.xlu0 %577
        %579 = vrot.lane.b32.xlu0 %v560, 8
        %v580 = vpop.permute.xlu0 %579
        %vm585 = vcmask 130112
        %586 = vst.msk [vmem:[#allocation3] sm:$0xff] %vm585, %v574
        %587 = vst.msk [vmem:[#allocation3 + $0x8] sm:$0xff] %vm585, %v576
        %588 = vst.msk [vmem:[#allocation3 + $0x10] sm:$0xff] %vm585, %v578
        %589 = vst.msk [vmem:[#allocation3 + $0x18] sm:$0xff] %vm585, %v580
        %594 = vrot.lane.b32.xlu0 %v561, 16
        %v595 = vpop.permute.xlu0 %594
        %596 = vrot.lane.b32.xlu0 %v562, 16
        %v597 = vpop.permute.xlu0 %596
        %598 = vrot.lane.b32.xlu0 %v563, 16
        %v599 = vpop.permute.xlu0 %598
        %600 = vrot.lane.b32.xlu0 %v564, 16
        %v601 = vpop.permute.xlu0 %600
        %vm606 = vcmask 195712
        %607 = vst.msk [vmem:[#allocation3] sm:$0xff] %vm606, %v595
        %608 = vst.msk [vmem:[#allocation3 + $0x8] sm:$0xff] %vm606, %v597
        %609 = vst.msk [vmem:[#allocation3 + $0x10] sm:$0xff] %vm606, %v599
        %610 = vst.msk [vmem:[#allocation3 + $0x18] sm:$0xff] %vm606, %v601
        %v611 = vld [vmem:[#allocation3] sm:$0xff]
        %v612 = vld [vmem:[#allocation3 + $0x8] sm:$0xff]
        %v613 = vld [vmem:[#allocation3 + $0x10] sm:$0xff]
        %v614 = vld [vmem:[#allocation3 + $0x18] sm:$0xff]
        %v615 = vld [vmem:[%s3] sm:$0xff]
        %v616 = vld [vmem:[%s3 + $0x8] sm:$0xff]
        %v617 = vld [vmem:[%s3 + $0x10] sm:$0xff]
        %v618 = vld [vmem:[%s4] sm:$0x1]
        %v620 = vlaneseq
        %v621 = vshrl.u32 %v620, 7
        %v622 = vsub.s32 0, %v621
        %v623 = vrot.slane %v618, %v622
        %vm625 = vcmask 195584
        %v627 = vsel %vm625, %v611, 0
        %v630 = vsel %vm625, %v612, 0
        %v633 = vsel %vm625, %v613, 0
        %v636 = vsel %vm625, %v614, 0
        %638 = vmatprep.subr.mxu0 0.0
        %639 = vmatpush1.msra.mxu0 %v615
        %640 = vmatprep.subr.mxu0 0.0
        %641 = vmatpush1.msra.mxu0 %v616
        %642 = vmatprep.subr.mxu0 0.0
        %643 = vmatpush1.msra.mxu0 %v617
        %644 = vmatprep.subr.mxu0 0.0
        %645 = vmatpush1.msra.mxu0 0.0
        %646 = vmatprep.subr.mxu0 0.0
        %647 = vmatpush1.msra.mxu0 0.0
        %648 = vmatprep.subr.mxu0 0.0
        %649 = vmatpush1.msra.mxu0 0.0
        %650 = vmatprep.subr.mxu0 0.0
        %651 = vmatpush1.msra.mxu0 0.0
        %652 = vmatprep.subr.mxu0 0.0
        %653 = vmatpush1.msra.mxu0 0.0
        %654 = vmatprep.subr.mxu0 0.0
        %655 = vmatpush1.msra.mxu0 0.0
        %656 = vmatprep.subr.mxu0 0.0
        %657 = vmatpush1.msra.mxu0 0.0
        %658 = vmatprep.subr.mxu0 0.0
        %659 = vmatpush1.msra.mxu0 0.0
        %660 = vmatprep.subr.mxu0 0.0
        %661 = vmatpush1.msra.mxu0 0.0
        %662 = vmatprep.subr.mxu0 0.0
        %663 = vmatpush1.msra.mxu0 0.0
        %664 = vmatprep.subr.mxu0 0.0
        %665 = vmatpush1.msra.mxu0 0.0
        %666 = vmatprep.subr.mxu0 0.0
        %667 = vmatpush1.msra.mxu0 0.0
        %668 = vmatprep.subr.mxu0 0.0
        %669 = vmatpush1.msra.mxu0 0.0
        %670 = vmatprep.subr.mxu0 0.0
        %671 = vmatpush1.msra.mxu0 0.0
        %672 = vmatprep.subr.mxu0 0.0
        %673 = vmatpush1.msra.mxu0 0.0
        %674 = vmatprep.subr.mxu0 0.0
        %675 = vmatpush1.msra.mxu0 0.0
        %676 = vmatprep.subr.mxu0 0.0
        %677 = vmatpush1.msra.mxu0 0.0
        %678 = vmatprep.subr.mxu0 0.0
        %679 = vmatpush1.msra.mxu0 0.0
        %680 = vmatprep.subr.mxu0 0.0
        %681 = vmatpush1.msra.mxu0 0.0
        %682 = vmatprep.subr.mxu0 0.0
        %683 = vmatpush1.msra.mxu0 0.0
        %684 = vmatprep.subr.mxu0 0.0
        %685 = vmatpush1.msra.mxu0 0.0
        %686 = vmatprep.subr.mxu0 0.0
        %687 = vmatpush1.msra.mxu0 0.0
        %688 = vmatprep.subr.mxu0 0.0
        %689 = vmatpush1.msra.mxu0 0.0
        %690 = vmatprep.subr.mxu0 0.0
        %691 = vmatpush1.msra.mxu0 0.0
        %692 = vmatprep.subr.mxu0 0.0
        %693 = vmatpush1.msra.mxu0 0.0
        %694 = vmatprep.subr.mxu0 0.0
        %695 = vmatpush1.msra.mxu0 0.0
        %696 = vmatprep.subr.mxu0 0.0
        %697 = vmatpush1.msra.mxu0 0.0
        %698 = vmatprep.subr.mxu0 0.0
        %699 = vmatpush1.msra.mxu0 0.0
        %700 = vmatprep.subr.mxu0 0.0
        %701 = vmatpush1.msra.mxu0 0.0
        %702 = vmatprep.mubr.f32.mxu0 0.0
        %703 = vmatmul.mubr.f32.gmra.mrb[0].mxu0 %v627
        %v704 = vpop.f32.mrb[0].mxu0
        %v705 = vadd.f32 %v623, %v704
        %v706 = vpop.f32.mrb[0].mxu0
        %707 = vmatprep.mubr.f32.mxu0 0.0
        %708 = vmatmul.mubr.f32.gmra.mrb[0].mxu0 %v630
        %v709 = vpop.f32.mrb[0].mxu0
        %v710 = vadd.f32 %v623, %v709
        %v711 = vpop.f32.mrb[0].mxu0
        %712 = vmatprep.mubr.f32.mxu0 0.0
        %713 = vmatmul.mubr.f32.gmra.mrb[0].mxu0 %v633
        %v714 = vpop.f32.mrb[0].mxu0
        %v715 = vadd.f32 %v623, %v714
        %v716 = vpop.f32.mrb[0].mxu0
        %717 = vmatprep.mubr.f32.mxu0 0.0
        %718 = vmatmul.mubr.f32.gmra.mrb[0].mxu0 %v636
        %v719 = vpop.f32.mrb[0].mxu0
        %v720 = vadd.f32 %v623, %v719
        %v721 = vpop.f32.mrb[0].mxu0
        %722 = vdwg.mxu0
        %v723 = vmax.f32 %v705, 0.0
        %v724 = vmax.f32 %v710, 0.0
        %v725 = vmax.f32 %v715, 0.0
        %v726 = vmax.f32 %v720, 0.0
        %vm727 = vcmask 130048
        %728 = vst.msk [vmem:[#allocation4] sm:$0xff] %vm727, %v723
        %729 = vst.msk [vmem:[#allocation4 + $0x8] sm:$0xff] %vm727, %v724
        %730 = vst.msk [vmem:[#allocation4 + $0x10] sm:$0xff] %vm727, %v725
        %731 = vst.msk [vmem:[#allocation4 + $0x18] sm:$0xff] %vm727, %v726
        %v732 = vld [vmem:[#allocation4] ss:$2 sm:$0xff]
        %v733 = vld [vmem:[%s528] ss:$2 sm:$0xff]
        %v734 = vld [vmem:[%s534] ss:$2 sm:$0xff]
        %v735 = vld [vmem:[%s536] ss:$2 sm:$0xff]
        %v736 = vmax.f32 %v732, %v734
        %v737 = vmax.f32 %v733, %v735
        %v738 = vlaneseq
        %vm739 = vcmp.ge.s32.totalorder %v738, 0
        %vm740 = vcmp.lt.s32.totalorder %v738, 16
        %vm741 = vmand %vm739, %vm740
        %742 = vst.msk [vmem:[#allocation5] sm:$0x1] %vm741, %v736
        %v745 = vunpack.c.l.s4 1966171168
        %v746 = vunpack.c.0.s8 %v745
        %v747 = vlaneseq
        %v748 = vshrl.u32 %v747, 7
        %v749 = vsub.s32 %v746, %v748
        %v750 = vrot.slane %v736, %v749
        %v751 = vcombine.high %v750, %v750
        %v753 = vunpack.c.l.s4 1966171168
        %v754 = vunpack.c.0.s8 %v753
        %v755 = vlaneseq
        %v756 = vshrl.u32 %v755, 7
        %v757 = vsub.s32 %v754, %v756
        %v758 = vrot.slane %v750, %v757
        %v760 = vunpack.c.l.s4 1966171168
        %v761 = vunpack.c.0.s8 %v760
        %v762 = vlaneseq
        %v763 = vshrl.u32 %v762, 7
        %v764 = vsub.s32 %v761, %v763
        %v765 = vrot.slane %v751, %v764
        %766 = vrot.lane.b32.xlu0 %v765, 16
        %v767 = vpop.permute.xlu0 %766
        %vm769 = vcmp.ge.s32.totalorder %v738, 16
        %vm770 = vcmp.lt.s32.totalorder %v738, 32
        %vm771 = vmand %vm769, %vm770
        %772 = vst.msk [vmem:[#allocation5] sm:$0x1] %vm771, %v767
        %v773 = vcombine.high %v758, %v758
        %774 = vrot.lane.b32.xlu0 %v773, 32
        %v775 = vpop.permute.xlu0 %774
        %vm777 = vcmp.ge.s32.totalorder %v738, 32
        %vm778 = vcmp.lt.s32.totalorder %v738, 48
        %vm779 = vmand %vm777, %vm778
        %780 = vst.msk [vmem:[#allocation5] sm:$0x1] %vm779, %v775
        %v781 = vcombine.high %v765, %v765
        %782 = vrot.lane.b32.xlu0 %v781, 48
        %v783 = vpop.permute.xlu0 %782
        %vm785 = vcmp.ge.s32.totalorder %v738, 48
        %vm786 = vcmp.lt.s32.totalorder %v738, 64
        %vm787 = vmand %vm785, %vm786
        %788 = vst.msk [vmem:[#allocation5] sm:$0x1] %vm787, %v783
        %v789 = vcombine.high %v736, %v736
        %v791 = vunpack.c.l.s4 1966171168
        %v792 = vunpack.c.0.s8 %v791
        %v793 = vlaneseq
        %v794 = vshrl.u32 %v793, 7
        %v795 = vsub.s32 %v792, %v794
        %v796 = vrot.slane %v789, %v795
        %v798 = vunpack.c.l.s4 1966171168
        %v799 = vunpack.c.0.s8 %v798
        %v800 = vlaneseq
        %v801 = vshrl.u32 %v800, 7
        %v802 = vsub.s32 %v799, %v801
        %v803 = vrot.slane %v796, %v802
        %804 = vrot.lane.b32.xlu0 %v803, 64
        %v805 = vpop.permute.xlu0 %804
        %vm807 = vcmp.ge.s32.totalorder %v738, 64
        %vm808 = vcmp.lt.s32.totalorder %v738, 80
        %vm809 = vmand %vm807, %vm808
        %810 = vst.msk [vmem:[#allocation5] sm:$0x1] %vm809, %v805
        %v811 = vcombine.high %v796, %v796
        %v813 = vunpack.c.l.s4 1966171168
        %v814 = vunpack.c.0.s8 %v813
        %v815 = vlaneseq
        %v816 = vshrl.u32 %v815, 7
        %v817 = vsub.s32 %v814, %v816
        %v818 = vrot.slane %v811, %v817
        %819 = vrot.lane.b32.xlu0 %v818, 80
        %v820 = vpop.permute.xlu0 %819
        %vm822 = vcmp.ge.s32.totalorder %v738, 80
        %vm823 = vcmp.lt.s32.totalorder %v738, 96
        %vm824 = vmand %vm822, %vm823
        %825 = vst.msk [vmem:[#allocation5] sm:$0x1] %vm824, %v820
        %v826 = vcombine.high %v803, %v803
        %827 = vrot.lane.b32.xlu0 %v826, 96
        %v828 = vpop.permute.xlu0 %827
        %vm830 = vcmp.ge.s32.totalorder %v738, 96
        %vm831 = vcmp.lt.s32.totalorder %v738, 112
        %vm832 = vmand %vm830, %vm831
        %833 = vst.msk [vmem:[#allocation5] sm:$0x1] %vm832, %v828
        %v834 = vcombine.high %v818, %v818
        %835 = vrot.lane.b32.xlu0 %v834, 112
        %v836 = vpop.permute.xlu0 %835
        %vm838 = vcmp.ge.s32.totalorder %v738, 112
        %vm839 = vcmp.lt.s32.totalorder %v738, 128
        %vm840 = vmand %vm838, %vm839
        %841 = vst.msk [vmem:[#allocation5] sm:$0x1] %vm840, %v836
        %842 = vst.msk [vmem:[#allocation5 + $0x1] sm:$0x1] %vm741, %v737
        %v845 = vunpack.c.l.s4 1966171168
        %v846 = vunpack.c.0.s8 %v845
        %v847 = vlaneseq
        %v848 = vshrl.u32 %v847, 7
        %v849 = vsub.s32 %v846, %v848
        %v850 = vrot.slane %v737, %v849
        %v851 = vcombine.high %v850, %v850
        %v853 = vunpack.c.l.s4 1966171168
        %v854 = vunpack.c.0.s8 %v853
        %v855 = vlaneseq
        %v856 = vshrl.u32 %v855, 7
        %v857 = vsub.s32 %v854, %v856
        %v858 = vrot.slane %v850, %v857
        %v860 = vunpack.c.l.s4 1966171168
        %v861 = vunpack.c.0.s8 %v860
        %v862 = vlaneseq
        %v863 = vshrl.u32 %v862, 7
        %v864 = vsub.s32 %v861, %v863
        %v865 = vrot.slane %v851, %v864
        %866 = vrot.lane.b32.xlu0 %v865, 16
        %v867 = vpop.permute.xlu0 %866
        %869 = vst.msk [vmem:[#allocation5 + $0x1] sm:$0x1] %vm771, %v867
        %v870 = vcombine.high %v858, %v858
        %871 = vrot.lane.b32.xlu0 %v870, 32
        %v872 = vpop.permute.xlu0 %871
        %874 = vst.msk [vmem:[#allocation5 + $0x1] sm:$0x1] %vm779, %v872
        %v875 = vcombine.high %v865, %v865
        %876 = vrot.lane.b32.xlu0 %v875, 48
        %v877 = vpop.permute.xlu0 %876
        %879 = vst.msk [vmem:[#allocation5 + $0x1] sm:$0x1] %vm787, %v877
        %v880 = vcombine.high %v737, %v737
        %v882 = vunpack.c.l.s4 1966171168
        %v883 = vunpack.c.0.s8 %v882
        %v884 = vlaneseq
        %v885 = vshrl.u32 %v884, 7
        %v886 = vsub.s32 %v883, %v885
        %v887 = vrot.slane %v880, %v886
        %v889 = vunpack.c.l.s4 1966171168
        %v890 = vunpack.c.0.s8 %v889
        %v891 = vlaneseq
        %v892 = vshrl.u32 %v891, 7
        %v893 = vsub.s32 %v890, %v892
        %v894 = vrot.slane %v887, %v893
        %895 = vrot.lane.b32.xlu0 %v894, 64
        %v896 = vpop.permute.xlu0 %895
        %898 = vst.msk [vmem:[#allocation5 + $0x1] sm:$0x1] %vm809, %v896
        %v899 = vcombine.high %v887, %v887
        %v901 = vunpack.c.l.s4 1966171168
        %v902 = vunpack.c.0.s8 %v901
        %v903 = vlaneseq
        %v904 = vshrl.u32 %v903, 7
        %v905 = vsub.s32 %v902, %v904
        %v906 = vrot.slane %v899, %v905
        %907 = vrot.lane.b32.xlu0 %v906, 80
        %v908 = vpop.permute.xlu0 %907
        %910 = vst.msk [vmem:[#allocation5 + $0x1] sm:$0x1] %vm824, %v908
        %v911 = vcombine.high %v894, %v894
        %912 = vrot.lane.b32.xlu0 %v911, 96
        %v913 = vpop.permute.xlu0 %912
        %915 = vst.msk [vmem:[#allocation5 + $0x1] sm:$0x1] %vm832, %v913
        %v916 = vcombine.high %v906, %v906
        %917 = vrot.lane.b32.xlu0 %v916, 112
        %v918 = vpop.permute.xlu0 %917
        %920 = vst.msk [vmem:[#allocation5 + $0x1] sm:$0x1] %vm840, %v918
        %v921 = vld [vmem:[#allocation5] sm:$0x3]
        %v922 = vld [vmem:[%s5] sm:$0xff]
        %v923 = vld [vmem:[%s5 + $0x8] sm:$0xff]
        %v924 = vld [vmem:[%s5 + $0x10] sm:$0xff]
        %v925 = vld [vmem:[%s5 + $0x18] sm:$0xff]
        %v926 = vld [vmem:[%s5 + $0x20] sm:$0xff]
        %v927 = vld [vmem:[%s5 + $0x28] sm:$0xff]
        %v928 = vld [vmem:[%s5 + $0x30] sm:$0xff]
        %v929 = vld [vmem:[%s5 + $0x38] sm:$0xff]
        %v930 = vld [vmem:[%s5 + $0x40] sm:$0xff]
        %v931 = vld [vmem:[%s5 + $0x48] sm:$0xff]
        %v932 = vld [vmem:[%s5 + $0x50] sm:$0xff]
        %v933 = vld [vmem:[%s5 + $0x58] sm:$0xff]
        %v934 = vld [vmem:[%s5 + $0x60] sm:$0xff]
        %v935 = vld [vmem:[%s5 + $0x68] sm:$0xff]
        %v936 = vld [vmem:[%s5 + $0x70] sm:$0xff]
        %v937 = vld [vmem:[%s5 + $0x78] sm:$0xff]
        %v938 = vld [vmem:[%s5 + $0x80] sm:$0xff]
        %v939 = vld [vmem:[%s5 + $0x88] sm:$0xff]
        %v940 = vld [vmem:[%s5 + $0x90] sm:$0xff]
        %v941 = vld [vmem:[%s5 + $0x98] sm:$0xff]
        %v942 = vld [vmem:[%s5 + $0xa0] sm:$0xff]
        %v943 = vld [vmem:[%s5 + $0xa8] sm:$0xff]
        %v944 = vld [vmem:[%s5 + $0xb0] sm:$0xff]
        %v945 = vld [vmem:[%s5 + $0xb8] sm:$0xff]
        %v946 = vld [vmem:[%s5 + $0xc0] sm:$0xff]
        %v947 = vld [vmem:[%s5 + $0xc8] sm:$0xff]
        %v948 = vld [vmem:[%s5 + $0xd0] sm:$0xff]
        %v949 = vld [vmem:[%s5 + $0xd8] sm:$0xff]
        %v950 = vld [vmem:[%s5 + $0xe0] sm:$0xff]
        %v951 = vld [vmem:[%s5 + $0xe8] sm:$0xff]
        %v952 = vld [vmem:[%s5 + $0xf0] sm:$0xff]
        %v953 = vld [vmem:[%s5 + $0xf8] sm:$0xff]
        %v954 = vld [vmem:[%s6] sm:$0x1]
        %v956 = vlaneseq
        %v957 = vshrl.u32 %v956, 7
        %v958 = vsub.s32 0, %v957
        %v959 = vrot.slane %v921, %v958
        %v960 = vlaneseq
        %v961 = vshrl.u32 %v960, 7
        %v962 = vsub.s32 1, %v961
        %v963 = vrot.slane %v921, %v962
        %966 = vmatprep.subr.mxu0 0.0
        %967 = vmatpush1.msra.mxu0 %v922
        %968 = vmatprep.subr.mxu0 0.0
        %969 = vmatpush1.msra.mxu0 %v923
        %970 = vmatprep.subr.mxu0 0.0
        %971 = vmatpush1.msra.mxu0 %v924
        %972 = vmatprep.subr.mxu0 0.0
        %973 = vmatpush1.msra.mxu0 %v925
        %974 = vmatprep.subr.mxu0 0.0
        %975 = vmatpush1.msra.mxu0 %v926
        %976 = vmatprep.subr.mxu0 0.0
        %977 = vmatpush1.msra.mxu0 %v927
        %978 = vmatprep.subr.mxu0 0.0
        %979 = vmatpush1.msra.mxu0 %v928
        %980 = vmatprep.subr.mxu0 0.0
        %981 = vmatpush1.msra.mxu0 %v929
        %982 = vmatprep.subr.mxu0 0.0
        %983 = vmatpush1.msra.mxu0 %v930
        %984 = vmatprep.subr.mxu0 0.0
        %985 = vmatpush1.msra.mxu0 %v931
        %986 = vmatprep.subr.mxu0 0.0
        %987 = vmatpush1.msra.mxu0 %v932
        %988 = vmatprep.subr.mxu0 0.0
        %989 = vmatpush1.msra.mxu0 %v933
        %990 = vmatprep.subr.mxu0 0.0
        %991 = vmatpush1.msra.mxu0 %v934
        %992 = vmatprep.subr.mxu0 0.0
        %993 = vmatpush1.msra.mxu0 %v935
        %994 = vmatprep.subr.mxu0 0.0
        %995 = vmatpush1.msra.mxu0 %v936
        %996 = vmatprep.subr.mxu0 0.0
        %997 = vmatpush1.msra.mxu0 %v937
        %998 = vmatprep.subr.mxu0 0.0
        %999 = vmatpush1.msra.mxu0 %v938
        %1000 = vmatprep.subr.mxu0 0.0
        %1001 = vmatpush1.msra.mxu0 %v939
        %1002 = vmatprep.subr.mxu0 0.0
        %1003 = vmatpush1.msra.mxu0 %v940
        %1004 = vmatprep.subr.mxu0 0.0
        %1005 = vmatpush1.msra.mxu0 %v941
        %1006 = vmatprep.subr.mxu0 0.0
        %1007 = vmatpush1.msra.mxu0 %v942
        %1008 = vmatprep.subr.mxu0 0.0
        %1009 = vmatpush1.msra.mxu0 %v943
        %1010 = vmatprep.subr.mxu0 0.0
        %1011 = vmatpush1.msra.mxu0 %v944
        %1012 = vmatprep.subr.mxu0 0.0
        %1013 = vmatpush1.msra.mxu0 %v945
        %1014 = vmatprep.subr.mxu0 0.0
        %1015 = vmatpush1.msra.mxu0 %v946
        %1016 = vmatprep.subr.mxu0 0.0
        %1017 = vmatpush1.msra.mxu0 %v947
        %1018 = vmatprep.subr.mxu0 0.0
        %1019 = vmatpush1.msra.mxu0 %v948
        %1020 = vmatprep.subr.mxu0 0.0
        %1021 = vmatpush1.msra.mxu0 %v949
        %1022 = vmatprep.subr.mxu0 0.0
        %1023 = vmatpush1.msra.mxu0 %v950
        %1024 = vmatprep.subr.mxu0 0.0
        %1025 = vmatpush1.msra.mxu0 %v951
        %1026 = vmatprep.subr.mxu0 0.0
        %1027 = vmatpush1.msra.mxu0 %v952
        %1028 = vmatprep.subr.mxu0 0.0
        %1029 = vmatpush1.msra.mxu0 %v953
        %1030 = vmatprep.mubr.f32.mxu0 %v963
        %1031 = vmatmul.mubr.f32.gmra.mrb[0].mxu0 %v959
        %v1032 = vpop.f32.mrb[0].mxu0
        %v1033 = vadd.f32 %v954, %v1032
        %v1034 = vpop.f32.mrb[0].mxu0
        %1035 = vdwg.mxu0
        %vm1036 = vcmask 32768
        %1037 = vst.msk [vmem:[%s270] sm:$0x1] %vm1036, %v1033
        %s1038 = sand.u32 %s181, 1
        %s1039 = scalar_lea.sflag [#allocation7], %s1038
        %s1040 = sand.u32 %s181, 1
        %s1041 = scalar_lea.vmem [#allocation6], %s1040
        // Predicated region
        $region49: #{my_network_cnn_forward.1} parent=47 // pred_check
          %p1042 = pneg %p191
        $region50: #{my_network_cnn_forward.1} parent=47 // pred_check_branch
          %1044 = sbr.rel (%p1042) target = $region52
        $region51: #{my_network_cnn_forward.1} parent=47 // pred_region
          %s1046 = ssub.s32 16, 16
          %1047 = vsyncadd %s1039, %s1046
          %s1048 = smul.addr %s21, 16
          %s1049 = scalar_lea.hbm %s7, %s1048
          %s1051 = sshll.u32 %s1041, 4
          %s1052 = int_to_ptr.vmem [resolvable:$true] %s1051
          %1054 = dma.vmem_to_hbm [thread:$0]  %s1052, 16, %s1049, %s1039
        $region52: #{my_network_cnn_forward.1} parent=47 // pred_fallthru
          _
      $region48: #{my_network_cnn_forward.1} parent=5 // pred_fallthru
        _
      %p1055 = scmp.le.s32.totalorder 2, %s16
      // Predicated region
      $region53: #{my_network_cnn_forward.1} parent=5 // pred_check
        %p1056 = pneg %p1055
      $region54: #{my_network_cnn_forward.1} parent=5 // pred_check_branch
        %1058 = sbr.rel (%p1056) target = $region56
      $region55: #{my_network_cnn_forward.1} parent=5 // pred_region
        %s1059 = ssub.s32 %s16, 2
        // Predicated region
        $region57: #{my_network_cnn_forward.1} parent=55 // pred_check
          %p1060 = pneg %p197
        $region58: #{my_network_cnn_forward.1} parent=55 // pred_check_branch
          %1062 = sbr.rel (%p1060) target = $region60
        $region59: #{my_network_cnn_forward.1} parent=55 // pred_region
          %s1063 = sand.u32 %s182, 1
          %s1064 = scalar_lea.sflag [#allocation7], %s1063
          %s1065 = sand.u32 %s182, 1
          %s1066 = scalar_lea.vmem [#allocation6], %s1065
          %1067 = dma.done %s1064, 16
        $region60: #{my_network_cnn_forward.1} parent=55 // pred_fallthru
          _
      $region56: #{my_network_cnn_forward.1} parent=5 // pred_fallthru
        _
    $region6: #{my_network_cnn_forward.1} parent=1 // loop_footer
      %s20 = sadd.s32 1, %s16
    $region7: #{my_network_cnn_forward.1} parent=1 // loop_footer_branch
      %15 = sbr.rel target = $region3
    $region8: #{my_network_cnn_forward.1} parent=1 // loop_exit
      _
    %1068 = vsyncpa [#allocation7], 1
    %s1069 = scalar_lea.sflag [#allocation7], 1
    %1070 = vsyncpa %s1069, 1

</llo_original>
